<compile_context>
chip_gen: v5e
topology: v5e:2x2
jax: 0.10.0
libtpu: 0.0.40
codegen_flags: <defaults>
</compile_context>

<pallas_src>
import functools

import jax
import jax.numpy as jnp
from jax.experimental import pallas as pl
from jax.experimental.pallas import tpu as pltpu


# Tile sizes: TM multiple of 8 (sublane), TN/TK multiples of 128 (lane).
# TN=128 is lane-dense and already saturates v5e's 4x128^2 MXU; on v6e/v7x
# bump TN/TK to 256 for the 2x256^2 MXU (tiles still fit v7x's 64 MiB VMEM).
TM, TN, TK = 256, 128, 256


def _round_up(x, m):
    return (x + m - 1) // m * m


def _pad2d(a, rows, cols):
    r, c = a.shape
    return jnp.pad(a, ((0, rows - r), (0, cols - c)))


# ----------------------------- Pallas kernels -----------------------------

def _mm_bn_kernel(x_ref, w_ref, s_ref, b_ref, o_ref, acc_ref, *, relu):
    """Tiled matmul + folded-BN affine (+ ReLU).  Grid = (M, N, K)."""
    k = pl.program_id(2)

    @pl.when(k == 0)
    def _():
        acc_ref[...] = jnp.zeros_like(acc_ref)

    acc_ref[...] += jnp.dot(x_ref[...], w_ref[...],
                            preferred_element_type=jnp.float32)

    @pl.when(k == pl.num_programs(2) - 1)
    def _():
        out = acc_ref[...] * s_ref[...] + b_ref[...]
        if relu:
            out = jnp.maximum(out, 0.0)
        o_ref[...] = out.astype(o_ref.dtype)


def _mm_bn_shortcut_relu_kernel(x_ref, w_ref, s_ref, b_ref,
                                xs_ref, ws_ref, ss_ref, bs_ref,
                                o_ref, acc_ref):
    """conv2 matmul + bn2 + fused shortcut (1x1 matmul + bn) + add + ReLU."""
    k = pl.program_id(2)

    @pl.when(k == 0)
    def _():
        acc_ref[...] = jnp.zeros_like(acc_ref)

    acc_ref[...] += jnp.dot(x_ref[...], w_ref[...],
                            preferred_element_type=jnp.float32)

    @pl.when(k == pl.num_programs(2) - 1)
    def _():
        sc = jnp.dot(xs_ref[...], ws_ref[...],
                     preferred_element_type=jnp.float32)
        sc = sc * ss_ref[...] + bs_ref[...]
        out = acc_ref[...] * s_ref[...] + b_ref[...] + sc
        o_ref[...] = jnp.maximum(out, 0.0).astype(o_ref.dtype)


# ------------------------------ kernel wrappers ----------------------------

_COMPILER_PARAMS = pltpu.CompilerParams(
    dimension_semantics=("parallel", "parallel", "arbitrary"))


def matmul_bn(cols, w, scale, shift, *, relu):
    """(M,K) @ (K,Cout) with folded-BN epilogue, tiled on the MXU."""
    M, K = cols.shape
    Cout = w.shape[1]
    Mp, Kp, Np = _round_up(M, TM), _round_up(K, TK), _round_up(Cout, TN)

    x = _pad2d(cols, Mp, Kp).astype(jnp.bfloat16)
    wp = _pad2d(w, Kp, Np).astype(jnp.bfloat16)
    sp = _pad2d(scale.reshape(1, -1), 1, Np)     # padded lanes = 0
    bp = _pad2d(shift.reshape(1, -1), 1, Np)     # padded lanes = 0

    grid = (Mp // TM, Np // TN, Kp // TK)
    out = pl.pallas_call(
        functools.partial(_mm_bn_kernel, relu=relu),
        out_shape=jax.ShapeDtypeStruct((Mp, Np), jnp.float32),
        grid_spec=pltpu.PrefetchScalarGridSpec(
            num_scalar_prefetch=0,
            grid=grid,
            in_specs=[
                pl.BlockSpec((TM, TK), lambda i, j, k: (i, k)),
                pl.BlockSpec((TK, TN), lambda i, j, k: (k, j)),
                pl.BlockSpec((1, TN), lambda i, j, k: (0, j)),
                pl.BlockSpec((1, TN), lambda i, j, k: (0, j)),
            ],
            out_specs=pl.BlockSpec((TM, TN), lambda i, j, k: (i, j)),
            scratch_shapes=[pltpu.VMEM((TM, TN), jnp.float32)],
        ),
        compiler_params=_COMPILER_PARAMS,
    )(x, wp, sp, bp)
    return out[:M, :Cout]


def matmul_bn_shortcut_relu(cols, w, scale, shift, xs, wsc, ssc, bsc):
    """conv2 + bn2 + fused shortcut (1x1 conv + bn) + residual add + ReLU."""
    M, K = cols.shape
    Cout = w.shape[1]
    Kc = xs.shape[1]
    Mp, Kp, Np = _round_up(M, TM), _round_up(K, TK), _round_up(Cout, TN)
    Kcp = _round_up(Kc, 128)

    x = _pad2d(cols, Mp, Kp).astype(jnp.bfloat16)
    wp = _pad2d(w, Kp, Np).astype(jnp.bfloat16)
    sp = _pad2d(scale.reshape(1, -1), 1, Np)
    bp = _pad2d(shift.reshape(1, -1), 1, Np)
    xsp = _pad2d(xs, Mp, Kcp).astype(jnp.bfloat16)
    wscp = _pad2d(wsc, Kcp, Np).astype(jnp.bfloat16)
    sscp = _pad2d(ssc.reshape(1, -1), 1, Np)
    bscp = _pad2d(bsc.reshape(1, -1), 1, Np)

    grid = (Mp // TM, Np // TN, Kp // TK)
    out = pl.pallas_call(
        _mm_bn_shortcut_relu_kernel,
        out_shape=jax.ShapeDtypeStruct((Mp, Np), jnp.float32),
        grid_spec=pltpu.PrefetchScalarGridSpec(
            num_scalar_prefetch=0,
            grid=grid,
            in_specs=[
                pl.BlockSpec((TM, TK), lambda i, j, k: (i, k)),
                pl.BlockSpec((TK, TN), lambda i, j, k: (k, j)),
                pl.BlockSpec((1, TN), lambda i, j, k: (0, j)),
                pl.BlockSpec((1, TN), lambda i, j, k: (0, j)),
                pl.BlockSpec((TM, Kcp), lambda i, j, k: (i, 0)),
                pl.BlockSpec((Kcp, TN), lambda i, j, k: (0, j)),
                pl.BlockSpec((1, TN), lambda i, j, k: (0, j)),
                pl.BlockSpec((1, TN), lambda i, j, k: (0, j)),
            ],
            out_specs=pl.BlockSpec((TM, TN), lambda i, j, k: (i, j)),
            scratch_shapes=[pltpu.VMEM((TM, TN), jnp.float32)],
        ),
        compiler_params=_COMPILER_PARAMS,
    )(x, wp, sp, bp, xsp, wscp, sscp, bscp)
    return out[:M, :Cout]


# ------------------------------- glue (JAX) --------------------------------

def im2col_3x3(x_nhwc, stride):
    """3x3, padding=1 patch extraction -> ((N*Ho*Wo, 9*C), (N, Ho, Wo))."""
    N, H, W, C = x_nhwc.shape
    xp = jnp.pad(x_nhwc, ((0, 0), (1, 1), (1, 1), (0, 0)))
    Ho = (H + 2 - 3) // stride + 1
    Wo = (W + 2 - 3) // stride + 1
    patches = []
    for dh in range(3):
        for dw in range(3):
            patches.append(
                xp[:, dh:dh + stride * (Ho - 1) + 1:stride,
                      dw:dw + stride * (Wo - 1) + 1:stride, :])
    cols = jnp.concatenate(patches, axis=-1)        # (kh, kw, cin) ordering
    return cols.reshape(N * Ho * Wo, 9 * C), (N, Ho, Wo)


def fold_bn(bn, eps=1e-5):
    scale = bn["gamma"] / jnp.sqrt(bn["var"] + eps)
    shift = bn["beta"] - bn["mean"] * scale
    return scale, shift


def conv_w_to_mat(w_oihw):
    # (O, I, kh, kw) -> (kh*kw*I, O), matching im2col's (kh, kw, cin) order.
    O = w_oihw.shape[0]
    return jnp.transpose(w_oihw, (2, 3, 1, 0)).reshape(-1, O)


def basic_block_forward(x_nchw, params, stride):
    # TODO(synk): if the surrounding model keeps NHWC, drop these transposes.
    x = jnp.transpose(x_nchw, (0, 2, 3, 1)).astype(jnp.float32)   # NHWC
    N, H, W, Cin = x.shape
    planes = params["conv1_w"].shape[0]

    # conv1 (3x3, stride, pad=1) + bn1 + relu  (tiled kernel A)
    cols1, (Nb, Ho, Wo) = im2col_3x3(x, stride)
    w1 = conv_w_to_mat(params["conv1_w"])
    s1, b1 = fold_bn(params["bn1"])
    out1 = matmul_bn(cols1, w1, s1, b1, relu=True)                # (M, planes)

    # shortcut expressed as a 1x1 matmul (projection conv or identity),
    # fused into the second kernel (never materialized in HBM).
    xs = x[:, ::stride, ::stride, :].reshape(-1, Cin)             # (M, Cin)
    if "sc_w" in params:
        wsc = params["sc_w"].reshape(planes, Cin).T               # (Cin, planes)
        ssc, bsc = fold_bn(params["bn_sc"])
    else:
        wsc = jnp.eye(Cin, dtype=jnp.float32)                     # identity
        ssc = jnp.ones((planes,), jnp.float32)
        bsc = jnp.zeros((planes,), jnp.float32)

    # conv2 (3x3, stride 1, pad=1) + bn2 + shortcut + add + relu (kernel B)
    out1_nhwc = out1.reshape(Nb, Ho, Wo, planes)
    cols2, _ = im2col_3x3(out1_nhwc, 1)
    w2 = conv_w_to_mat(params["conv2_w"])
    s2, b2 = fold_bn(params["bn2"])
    out = matmul_bn_shortcut_relu(cols2, w2, s2, b2, xs, wsc, ssc, bsc)

    out = out.reshape(Nb, Ho, Wo, planes)
    return jnp.transpose(out, (0, 3, 1, 2))                       # back to NCHW


# ------------------------- reference (plain JAX) ---------------------------

def ref_forward(x, p, stride, eps=1e-5):
    def conv(x, w, s, pad):
        return jax.lax.conv_general_dilated(
            x, w, (s, s), ((pad, pad), (pad, pad)),
            dimension_numbers=("NCHW", "OIHW", "NCHW"))

    def bn(x, b):
        s = b["gamma"] / jnp.sqrt(b["var"] + eps)
        sh = b["beta"] - b["mean"] * s
        return x * s[None, :, None, None] + sh[None, :, None, None]

    out = jax.nn.relu(bn(conv(x, p["conv1_w"], stride, 1), p["bn1"]))
    out = bn(conv(out, p["conv2_w"], 1, 1), p["bn2"])
    if "sc_w" in p:
        sc = bn(conv(x, p["sc_w"], stride, 0), p["bn_sc"])
    else:
        sc = x
    return jax.nn.relu(out + sc)


# ------------------------------- params init -------------------------------

def init_bn(key, c):
    k1, k2, k3, k4 = jax.random.split(key, 4)
    return {
        "gamma": jax.random.uniform(k1, (c,), jnp.float32, 0.5, 1.5),
        "beta": 0.1 * jax.random.normal(k2, (c,), jnp.float32),
        "mean": 0.1 * jax.random.normal(k3, (c,), jnp.float32),
        "var": jax.random.uniform(k4, (c,), jnp.float32, 0.5, 1.5),
    }


def init_basic_block(key, in_planes, planes, stride):
    keys = jax.random.split(key, 6)
    params = {
        "conv1_w": 0.1 * jax.random.normal(keys[0], (planes, in_planes, 3, 3), jnp.float32),
        "bn1": init_bn(keys[1], planes),
        "conv2_w": 0.1 * jax.random.normal(keys[2], (planes, planes, 3, 3), jnp.float32),
        "bn2": init_bn(keys[3], planes),
    }
    if stride != 1 or in_planes != planes:
        params["sc_w"] = 0.1 * jax.random.normal(keys[4], (planes, in_planes, 1, 1), jnp.float32)
        params["bn_sc"] = init_bn(keys[5], planes)
    return params


# ---------------------------------- main ------------------------------------

if __name__ == "__main__":
    key = jax.random.PRNGKey(0)

    configs = [
        # (batch, in_planes, planes, stride, hw)  -- projection shortcut
        (2, 4, 8, 2, 16),
        # identity shortcut
        (2, 8, 8, 1, 16),
    ]

    for idx, (batch, in_planes, planes, stride, hw) in enumerate(configs):
        k_x, k_p, key = jax.random.split(key, 3)
        x = jax.random.normal(k_x, (batch, in_planes, hw, hw), jnp.float32)  # NCHW
        params = init_basic_block(k_p, in_planes, planes, stride)

        out = jax.block_until_ready(basic_block_forward(x, params, stride))
        ref = jax.block_until_ready(ref_forward(x, params, stride))

        assert out.shape == ref.shape, (out.shape, ref.shape)
        # bf16 MXU inputs + f32 accumulation: allow bf16-level relative error.
        err = float(jnp.max(jnp.abs(out - ref)))
        tol = 3e-2 * (1.0 + float(jnp.max(jnp.abs(ref))))
        assert err < tol, (idx, err, tol)

    print("KERNEL_OK")
</pallas_src>

<mosaic_0001>
module attributes {stable_mosaic.version = 11 : i64} {
  func.func @_mm_bn_kernel(%arg0: i32, %arg1: i32, %arg2: i32, %arg3: memref<256x256xbf16, #tpu.memory_space<vmem>>, %arg4: memref<256x128xbf16, #tpu.memory_space<vmem>>, %arg5: memref<1x128xf32, #tpu.memory_space<vmem>>, %arg6: memref<1x128xf32, #tpu.memory_space<vmem>>, %arg7: memref<256x128xf32, #tpu.memory_space<vmem>>, %arg8: memref<256x128xf32, #tpu.memory_space<vmem>>) attributes {dimension_semantics = [#tpu.dimension_semantics<parallel>, #tpu.dimension_semantics<parallel>, #tpu.dimension_semantics<arbitrary>], iteration_bounds = array<i64: 1, 1, 1>, scalar_prefetch = 0 : i64, scratch_operands = 1 : i64, tpu.core_type = #tpu.core_type<tc>, window_params = [{transform_indices = @transform_0, window_bounds = array<i64: 256, 256>}, {transform_indices = @transform_1, window_bounds = array<i64: 256, 128>}, {transform_indices = @transform_2, window_bounds = array<i64: 1, 128>}, {transform_indices = @transform_3, window_bounds = array<i64: 1, 128>}, {transform_indices = @transform_4, window_bounds = array<i64: 256, 128>}]} {
    %c0_i32 = arith.constant 0 : i32
    %0 = arith.cmpi eq, %arg2, %c0_i32 : i32
    %1 = arith.extui %0 : i1 to i32
    %c0_i32_0 = arith.constant 0 : i32
    %2 = arith.cmpi ne, %1, %c0_i32_0 : i32
    scf.if %2 {
      %cst_10 = arith.constant 0.000000e+00 : f32
      %12 = vector.broadcast %cst_10 : f32 to vector<256x128xf32>
      %c0_11 = arith.constant 0 : index
      %c0_12 = arith.constant 0 : index
      %13 = vector.load %arg8[%c0_11, %c0_12] : memref<256x128xf32, #tpu.memory_space<vmem>>, vector<256x128xf32>
      tpu.vector_store %arg8[%c0_11, %c0_12], %12 {strides = array<i32>} : memref<256x128xf32, #tpu.memory_space<vmem>>, vector<256x128xf32>,
    } else {
    }
    %c0 = arith.constant 0 : index
    %c0_1 = arith.constant 0 : index
    %3 = vector.load %arg8[%c0, %c0_1] : memref<256x128xf32, #tpu.memory_space<vmem>>, vector<256x128xf32>
    %c0_2 = arith.constant 0 : index
    %c0_3 = arith.constant 0 : index
    %4 = vector.load %arg3[%c0_2, %c0_3] : memref<256x256xbf16, #tpu.memory_space<vmem>>, vector<256x256xbf16>
    %c0_4 = arith.constant 0 : index
    %c0_5 = arith.constant 0 : index
    %5 = vector.load %arg4[%c0_4, %c0_5] : memref<256x128xbf16, #tpu.memory_space<vmem>>, vector<256x128xbf16>
    %cst = arith.constant dense<0.000000e+00> : vector<256x128xf32>
    %6 = tpu.matmul %4, %5, %cst {dimension_numbers = #tpu.dot_dimension_numbers<[1], [0], [0], [1], [0, 0, 1, 1], [], []>} : vector<256x256xbf16>, vector<256x128xbf16>, vector<256x128xf32> -> vector<256x128xf32>
    %7 = arith.addf %3, %6 : vector<256x128xf32>
    %c0_6 = arith.constant 0 : index
    %c0_7 = arith.constant 0 : index
    %8 = vector.load %arg8[%c0_6, %c0_7] : memref<256x128xf32, #tpu.memory_space<vmem>>, vector<256x128xf32>
    tpu.vector_store %arg8[%c0_6, %c0_7], %7 {strides = array<i32>} : memref<256x128xf32, #tpu.memory_space<vmem>>, vector<256x128xf32>,
    %c0_i32_8 = arith.constant 0 : i32
    %9 = arith.cmpi eq, %arg2, %c0_i32_8 : i32
    %10 = arith.extui %9 : i1 to i32
    %c0_i32_9 = arith.constant 0 : i32
    %11 = arith.cmpi ne, %10, %c0_i32_9 : i32
    scf.if %11 {
      %c0_10 = arith.constant 0 : index
      %c0_11 = arith.constant 0 : index
      %12 = vector.load %arg8[%c0_10, %c0_11] : memref<256x128xf32, #tpu.memory_space<vmem>>, vector<256x128xf32>
      %c0_12 = arith.constant 0 : index
      %c0_13 = arith.constant 0 : index
      %13 = vector.load %arg5[%c0_12, %c0_13] : memref<1x128xf32, #tpu.memory_space<vmem>>, vector<1x128xf32>
      %14 = vector.broadcast %13 : vector<1x128xf32> to vector<256x128xf32>
      %15 = arith.mulf %12, %14 : vector<256x128xf32>
      %c0_14 = arith.constant 0 : index
      %c0_15 = arith.constant 0 : index
      %16 = vector.load %arg6[%c0_14, %c0_15] : memref<1x128xf32, #tpu.memory_space<vmem>>, vector<1x128xf32>
      %17 = vector.broadcast %16 : vector<1x128xf32> to vector<256x128xf32>
      %18 = arith.addf %15, %17 : vector<256x128xf32>
      %cst_16 = arith.constant 0.000000e+00 : f32
      %19 = vector.broadcast %cst_16 : f32 to vector<256x128xf32>
      %20 = arith.maximumf %18, %19 : vector<256x128xf32>
      %c0_17 = arith.constant 0 : index
      %c0_18 = arith.constant 0 : index
      %21 = vector.load %arg7[%c0_17, %c0_18] : memref<256x128xf32, #tpu.memory_space<vmem>>, vector<256x128xf32>
      tpu.vector_store %arg7[%c0_17, %c0_18], %20 {strides = array<i32>} : memref<256x128xf32, #tpu.memory_space<vmem>>, vector<256x128xf32>,
    } else {
    }
    return
  }
  func.func @transform_0(%arg0: i32, %arg1: i32, %arg2: i32) -> (i32, i32) {
    %c0_i32 = arith.constant 0 : i32
    return %arg0, %arg2 : i32, i32
  }
  func.func @transform_1(%arg0: i32, %arg1: i32, %arg2: i32) -> (i32, i32) {
    %c0_i32 = arith.constant 0 : i32
    return %arg2, %arg1 : i32, i32
  }
  func.func @transform_2(%arg0: i32, %arg1: i32, %arg2: i32) -> (i32, i32) {
    %c0_i32 = arith.constant 0 : i32
    %c0_i32_0 = arith.constant 0 : i32
    return %c0_i32, %arg1 : i32, i32
  }
  func.func @transform_3(%arg0: i32, %arg1: i32, %arg2: i32) -> (i32, i32) {
    %c0_i32 = arith.constant 0 : i32
    %c0_i32_0 = arith.constant 0 : i32
    return %c0_i32, %arg1 : i32, i32
  }
  func.func @transform_4(%arg0: i32, %arg1: i32, %arg2: i32) -> (i32, i32) {
    %c0_i32 = arith.constant 0 : i32
    return %arg0, %arg1 : i32, i32
  }
}

</mosaic_0001>

<llo_original>
// kernel: tpu_custom_call.1
$region0: #{tpu_custom_call.1}
  #allocation0 [shape = 'u32[]', space=smem, size = 0x4, offset = 0x4, fixed_abs, tag = 'smem constant byte address 0x4 - core index']
  #allocation1 [shape = 'u32[72,128]{1,0:T(1,128)}', space=vmem, size = 0x9000, scoped, tag = 'internal scratch']
  #allocation2 [shape = 'f32[256,128]{1,0:T(8,128)}', space=vmem, size = 0x20000, scoped, tag = 'scratch operand']
  %s0 = inlined_call_operand.hbm [shape: bf16[256,256], index: 0, kind: input, shape index: {}]
  %s1 = inlined_call_operand.hbm [shape: bf16[256,128], index: 1, kind: input, shape index: {}]
  %s2 = inlined_call_operand.vmem [shape: f32[1,128], index: 2, kind: input, shape index: {}]
  %s3 = inlined_call_operand.vmem [shape: f32[1,128], index: 3, kind: input, shape index: {}]
  %s4 = inlined_call_operand.hbm [shape: f32[256,128], index: 4, kind: output, shape index: {}]
  %s5 = sld [smem:[#allocation0]]
  $region42: #{tpu_custom_call.1} parent=0
    _
  %s7 = ssub.s32 1, %s5
  %s8 = scalar_select 0, %s7, %s5
  $region1: #{tpu_custom_call.1} parent=0
    #allocation3 [shape = 'u8[131072]{0}', space=vmem, size = 0x20000, scoped, tag = 'input window, operand 0, single buffered']
    #allocation4 [shape = 's32[1]{0}', space=sflag, size = 0x4, scoped, tag = 'scoped memory for tpu_custom_call.1']
    #allocation5 [shape = 's32[1]{0}', space=sflag, size = 0x4, scoped, tag = 'scoped memory for tpu_custom_call.1']
    #allocation6 [shape = 'u8[65536]{0}', space=vmem, size = 0x10000, scoped, tag = 'input window, operand 1, single buffered']
    #allocation7 [shape = 's32[1]{0}', space=sflag, size = 0x4, scoped, tag = 'scoped memory for tpu_custom_call.1']
    #allocation8 [shape = 'u8[131072]{0}', space=vmem, size = 0x20000, scoped, tag = 'output window, operand 0, single buffered']
    %9 = vsyncpa [#allocation4], 0
    %10 = vsyncpa [#allocation7], 0
    %11 = vsyncpa [#allocation5], 0
    // Predicated region
    $region2: #{tpu_custom_call.1} parent=1 // pred_check
      _
    $region3: #{tpu_custom_call.1} parent=1 // pred_check_branch
      %13 = sbr.rel (0) target = $region5
    $region4: #{tpu_custom_call.1} parent=1 // pred_region
      %15 = vsyncadd [#allocation4], 0
      %s16 = sshll.u32 %s0, 4
      %s17 = int_to_ptr.hbm [resolvable:$true] %s16
      %s18 = sshll.u32 [#allocation3], 4
      %s19 = int_to_ptr.vmem [resolvable:$true] %s18
      %24 = dma.hbm_to_vmem [thread:$0]  %s17, 4096, %s19, [#allocation4], 128, 128, 8
    $region5: #{tpu_custom_call.1} parent=1 // pred_fallthru
      _
    // Predicated region
    $region6: #{tpu_custom_call.1} parent=1 // pred_check
      _
    $region7: #{tpu_custom_call.1} parent=1 // pred_check_branch
      %26 = sbr.rel (0) target = $region9
    $region8: #{tpu_custom_call.1} parent=1 // pred_region
      %28 = vsyncadd [#allocation7], 0
      %s29 = sshll.u32 %s1, 4
      %s30 = int_to_ptr.hbm [resolvable:$true] %s29
      %s31 = sshll.u32 [#allocation6], 4
      %s32 = int_to_ptr.vmem [resolvable:$true] %s31
      %37 = dma.hbm_to_vmem [thread:$0]  %s30, 2048, %s32, [#allocation7], 64, 64, 4
    $region9: #{tpu_custom_call.1} parent=1 // pred_fallthru
      _
    // Predicated region
    $region10: #{tpu_custom_call.1} parent=1 // pred_check
      _
    $region11: #{tpu_custom_call.1} parent=1 // pred_check_branch
      %39 = sbr.rel (0) target = $region13
    $region12: #{tpu_custom_call.1} parent=1 // pred_region
      _
    $region13: #{tpu_custom_call.1} parent=1 // pred_fallthru
      _
    // Predicated region
    $region14: #{tpu_custom_call.1} parent=1 // pred_check
      _
    $region15: #{tpu_custom_call.1} parent=1 // pred_check_branch
      %41 = sbr.rel (0) target = $region17
    $region16: #{tpu_custom_call.1} parent=1 // pred_region
      _
    $region17: #{tpu_custom_call.1} parent=1 // pred_fallthru
      _
    // Predicated region
    $region18: #{tpu_custom_call.1} parent=1 // pred_check
      _
    $region19: #{tpu_custom_call.1} parent=1 // pred_check_branch
      %43 = sbr.rel (0) target = $region21
    $region20: #{tpu_custom_call.1} parent=1 // pred_region
      %45 = dma.done [#allocation4], 4096
    $region21: #{tpu_custom_call.1} parent=1 // pred_fallthru
      _
    // Predicated region
    $region22: #{tpu_custom_call.1} parent=1 // pred_check
      _
    $region23: #{tpu_custom_call.1} parent=1 // pred_check_branch
      %47 = sbr.rel (0) target = $region25
    $region24: #{tpu_custom_call.1} parent=1 // pred_region
      %49 = dma.done [#allocation7], 2048
    $region25: #{tpu_custom_call.1} parent=1 // pred_fallthru
      _
    %p50 = scmp.eq.s32.totalorder 0, 0
    // Predicated region
    $region26: #{tpu_custom_call.1} parent=1 // pred_check
      %p51 = pneg %p50
    $region27: #{tpu_custom_call.1} parent=1 // pred_check_branch
      %53 = sbr.rel (%p51) target = $region29
    $region28: #{tpu_custom_call.1} parent=1 // pred_region
      %54 = vst [vmem:[#allocation2] sm:$0xff] 0.0
      %55 = vst [vmem:[#allocation2 + $0x8] sm:$0xff] 0.0
      %56 = vst [vmem:[#allocation2 + $0x10] sm:$0xff] 0.0
      %57 = vst [vmem:[#allocation2 + $0x18] sm:$0xff] 0.0
      %58 = vst [vmem:[#allocation2 + $0x20] sm:$0xff] 0.0
      %59 = vst [vmem:[#allocation2 + $0x28] sm:$0xff] 0.0
      %60 = vst [vmem:[#allocation2 + $0x30] sm:$0xff] 0.0
      %61 = vst [vmem:[#allocation2 + $0x38] sm:$0xff] 0.0
      %62 = vst [vmem:[#allocation2 + $0x40] sm:$0xff] 0.0
      %63 = vst [vmem:[#allocation2 + $0x48] sm:$0xff] 0.0
      %64 = vst [vmem:[#allocation2 + $0x50] sm:$0xff] 0.0
      %65 = vst [vmem:[#allocation2 + $0x58] sm:$0xff] 0.0
      %66 = vst [vmem:[#allocation2 + $0x60] sm:$0xff] 0.0
      %67 = vst [vmem:[#allocation2 + $0x68] sm:$0xff] 0.0
      %68 = vst [vmem:[#allocation2 + $0x70] sm:$0xff] 0.0
      %69 = vst [vmem:[#allocation2 + $0x78] sm:$0xff] 0.0
      %70 = vst [vmem:[#allocation2 + $0x80] sm:$0xff] 0.0
      %71 = vst [vmem:[#allocation2 + $0x88] sm:$0xff] 0.0
      %72 = vst [vmem:[#allocation2 + $0x90] sm:$0xff] 0.0
      %73 = vst [vmem:[#allocation2 + $0x98] sm:$0xff] 0.0
      %74 = vst [vmem:[#allocation2 + $0xa0] sm:$0xff] 0.0
      %75 = vst [vmem:[#allocation2 + $0xa8] sm:$0xff] 0.0
      %76 = vst [vmem:[#allocation2 + $0xb0] sm:$0xff] 0.0
      %77 = vst [vmem:[#allocation2 + $0xb8] sm:$0xff] 0.0
      %78 = vst [vmem:[#allocation2 + $0xc0] sm:$0xff] 0.0
      %79 = vst [vmem:[#allocation2 + $0xc8] sm:$0xff] 0.0
      %80 = vst [vmem:[#allocation2 + $0xd0] sm:$0xff] 0.0
      %81 = vst [vmem:[#allocation2 + $0xd8] sm:$0xff] 0.0
      %82 = vst [vmem:[#allocation2 + $0xe0] sm:$0xff] 0.0
      %83 = vst [vmem:[#allocation2 + $0xe8] sm:$0xff] 0.0
      %84 = vst [vmem:[#allocation2 + $0xf0] sm:$0xff] 0.0
      %85 = vst [vmem:[#allocation2 + $0xf8] sm:$0xff] 0.0
    $region29: #{tpu_custom_call.1} parent=1 // pred_fallthru
      _
    %v86 = vld [vmem:[#allocation2] sm:$0xff]
    %v87 = vld [vmem:[#allocation2 + $0x8] sm:$0xff]
    %v88 = vld [vmem:[#allocation2 + $0x10] sm:$0xff]
    %v89 = vld [vmem:[#allocation2 + $0x18] sm:$0xff]
    %v90 = vld [vmem:[#allocation2 + $0x20] sm:$0xff]
    %v91 = vld [vmem:[#allocation2 + $0x28] sm:$0xff]
    %v92 = vld [vmem:[#allocation2 + $0x30] sm:$0xff]
    %v93 = vld [vmem:[#allocation2 + $0x38] sm:$0xff]
    %v94 = vld [vmem:[#allocation2 + $0x40] sm:$0xff]
    %v95 = vld [vmem:[#allocation2 + $0x48] sm:$0xff]
    %v96 = vld [vmem:[#allocation2 + $0x50] sm:$0xff]
    %v97 = vld [vmem:[#allocation2 + $0x58] sm:$0xff]
    %v98 = vld [vmem:[#allocation2 + $0x60] sm:$0xff]
    %v99 = vld [vmem:[#allocation2 + $0x68] sm:$0xff]
    %v100 = vld [vmem:[#allocation2 + $0x70] sm:$0xff]
    %v101 = vld [vmem:[#allocation2 + $0x78] sm:$0xff]
    %v102 = vld [vmem:[#allocation2 + $0x80] sm:$0xff]
    %v103 = vld [vmem:[#allocation2 + $0x88] sm:$0xff]
    %v104 = vld [vmem:[#allocation2 + $0x90] sm:$0xff]
    %v105 = vld [vmem:[#allocation2 + $0x98] sm:$0xff]
    %v106 = vld [vmem:[#allocation2 + $0xa0] sm:$0xff]
    %v107 = vld [vmem:[#allocation2 + $0xa8] sm:$0xff]
    %v108 = vld [vmem:[#allocation2 + $0xb0] sm:$0xff]
    %v109 = vld [vmem:[#allocation2 + $0xb8] sm:$0xff]
    %v110 = vld [vmem:[#allocation2 + $0xc0] sm:$0xff]
    %v111 = vld [vmem:[#allocation2 + $0xc8] sm:$0xff]
    %v112 = vld [vmem:[#allocation2 + $0xd0] sm:$0xff]
    %v113 = vld [vmem:[#allocation2 + $0xd8] sm:$0xff]
    %v114 = vld [vmem:[#allocation2 + $0xe0] sm:$0xff]
    %v115 = vld [vmem:[#allocation2 + $0xe8] sm:$0xff]
    %v116 = vld [vmem:[#allocation2 + $0xf0] sm:$0xff]
    %v117 = vld [vmem:[#allocation2 + $0xf8] sm:$0xff]
    %v118 = vld [vmem:[#allocation3] sm:$0xff]
    %v119 = vld [vmem:[#allocation3 + $0x8] sm:$0xff]
    %v120 = vld [vmem:[#allocation3 + $0x10] sm:$0xff]
    %v121 = vld [vmem:[#allocation3 + $0x18] sm:$0xff]
    %v122 = vld [vmem:[#allocation3 + $0x20] sm:$0xff]
    %v123 = vld [vmem:[#allocation3 + $0x28] sm:$0xff]
    %v124 = vld [vmem:[#allocation3 + $0x30] sm:$0xff]
    %v125 = vld [vmem:[#allocation3 + $0x38] sm:$0xff]
    %v126 = vld [vmem:[#allocation3 + $0x40] sm:$0xff]
    %v127 = vld [vmem:[#allocation3 + $0x48] sm:$0xff]
    %v128 = vld [vmem:[#allocation3 + $0x50] sm:$0xff]
    %v129 = vld [vmem:[#allocation3 + $0x58] sm:$0xff]
    %v130 = vld [vmem:[#allocation3 + $0x60] sm:$0xff]
    %v131 = vld [vmem:[#allocation3 + $0x68] sm:$0xff]
    %v132 = vld [vmem:[#allocation3 + $0x70] sm:$0xff]
    %v133 = vld [vmem:[#allocation3 + $0x78] sm:$0xff]
    %v134 = vld [vmem:[#allocation3 + $0x80] sm:$0xff]
    %v135 = vld [vmem:[#allocation3 + $0x88] sm:$0xff]
    %v136 = vld [vmem:[#allocation3 + $0x90] sm:$0xff]
    %v137 = vld [vmem:[#allocation3 + $0x98] sm:$0xff]
    %v138 = vld [vmem:[#allocation3 + $0xa0] sm:$0xff]
    %v139 = vld [vmem:[#allocation3 + $0xa8] sm:$0xff]
    %v140 = vld [vmem:[#allocation3 + $0xb0] sm:$0xff]
    %v141 = vld [vmem:[#allocation3 + $0xb8] sm:$0xff]
    %v142 = vld [vmem:[#allocation3 + $0xc0] sm:$0xff]
    %v143 = vld [vmem:[#allocation3 + $0xc8] sm:$0xff]
    %v144 = vld [vmem:[#allocation3 + $0xd0] sm:$0xff]
    %v145 = vld [vmem:[#allocation3 + $0xd8] sm:$0xff]
    %v146 = vld [vmem:[#allocation3 + $0xe0] sm:$0xff]
    %v147 = vld [vmem:[#allocation3 + $0xe8] sm:$0xff]
    %v148 = vld [vmem:[#allocation3 + $0xf0] sm:$0xff]
    %v149 = vld [vmem:[#allocation3 + $0xf8] sm:$0xff]
    %v150 = vld [vmem:[#allocation6] sm:$0xf]
    %v151 = vld [vmem:[#allocation6 + $0x4] sm:$0xf]
    %v152 = vld [vmem:[#allocation6 + $0x8] sm:$0xf]
    %v153 = vld [vmem:[#allocation6 + $0xc] sm:$0xf]
    %v154 = vld [vmem:[#allocation6 + $0x10] sm:$0xf]
    %v155 = vld [vmem:[#allocation6 + $0x14] sm:$0xf]
    %v156 = vld [vmem:[#allocation6 + $0x18] sm:$0xf]
    %v157 = vld [vmem:[#allocation6 + $0x1c] sm:$0xf]
    %v158 = vld [vmem:[#allocation6 + $0x20] sm:$0xf]
    %v159 = vld [vmem:[#allocation6 + $0x24] sm:$0xf]
    %v160 = vld [vmem:[#allocation6 + $0x28] sm:$0xf]
    %v161 = vld [vmem:[#allocation6 + $0x2c] sm:$0xf]
    %v162 = vld [vmem:[#allocation6 + $0x30] sm:$0xf]
    %v163 = vld [vmem:[#allocation6 + $0x34] sm:$0xf]
    %v164 = vld [vmem:[#allocation6 + $0x38] sm:$0xf]
    %v165 = vld [vmem:[#allocation6 + $0x3c] sm:$0xf]
    %v166 = vld [vmem:[#allocation6 + $0x40] sm:$0xf]
    %v167 = vld [vmem:[#allocation6 + $0x44] sm:$0xf]
    %v168 = vld [vmem:[#allocation6 + $0x48] sm:$0xf]
    %v169 = vld [vmem:[#allocation6 + $0x4c] sm:$0xf]
    %v170 = vld [vmem:[#allocation6 + $0x50] sm:$0xf]
    %v171 = vld [vmem:[#allocation6 + $0x54] sm:$0xf]
    %v172 = vld [vmem:[#allocation6 + $0x58] sm:$0xf]
    %v173 = vld [vmem:[#allocation6 + $0x5c] sm:$0xf]
    %v174 = vld [vmem:[#allocation6 + $0x60] sm:$0xf]
    %v175 = vld [vmem:[#allocation6 + $0x64] sm:$0xf]
    %v176 = vld [vmem:[#allocation6 + $0x68] sm:$0xf]
    %v177 = vld [vmem:[#allocation6 + $0x6c] sm:$0xf]
    %v178 = vld [vmem:[#allocation6 + $0x70] sm:$0xf]
    %v179 = vld [vmem:[#allocation6 + $0x74] sm:$0xf]
    %v180 = vld [vmem:[#allocation6 + $0x78] sm:$0xf]
    %v181 = vld [vmem:[#allocation6 + $0x7c] sm:$0xf]
    %v214 = vunpack.c.l.b16 %v118
    %v215 = vunpack.c.h.b16 %v118
    %v216 = vunpack.c.l.b16 %v119
    %v217 = vunpack.c.h.b16 %v119
    %v218 = vunpack.c.l.b16 %v120
    %v219 = vunpack.c.h.b16 %v120
    %v220 = vunpack.c.l.b16 %v121
    %v221 = vunpack.c.h.b16 %v121
    %v222 = vunpack.c.l.b16 %v122
    %v223 = vunpack.c.h.b16 %v122
    %v224 = vunpack.c.l.b16 %v123
    %v225 = vunpack.c.h.b16 %v123
    %v226 = vunpack.c.l.b16 %v124
    %v227 = vunpack.c.h.b16 %v124
    %v228 = vunpack.c.l.b16 %v125
    %v229 = vunpack.c.h.b16 %v125
    %v230 = vunpack.c.l.b16 %v126
    %v231 = vunpack.c.h.b16 %v126
    %v232 = vunpack.c.l.b16 %v127
    %v233 = vunpack.c.h.b16 %v127
    %v234 = vunpack.c.l.b16 %v128
    %v235 = vunpack.c.h.b16 %v128
    %v236 = vunpack.c.l.b16 %v129
    %v237 = vunpack.c.h.b16 %v129
    %v238 = vunpack.c.l.b16 %v130
    %v239 = vunpack.c.h.b16 %v130
    %v240 = vunpack.c.l.b16 %v131
    %v241 = vunpack.c.h.b16 %v131
    %v242 = vunpack.c.l.b16 %v132
    %v243 = vunpack.c.h.b16 %v132
    %v244 = vunpack.c.l.b16 %v133
    %v245 = vunpack.c.h.b16 %v133
    %v246 = vunpack.c.l.b16 %v134
    %v247 = vunpack.c.h.b16 %v134
    %v248 = vunpack.c.l.b16 %v135
    %v249 = vunpack.c.h.b16 %v135
    %v250 = vunpack.c.l.b16 %v136
    %v251 = vunpack.c.h.b16 %v136
    %v252 = vunpack.c.l.b16 %v137
    %v253 = vunpack.c.h.b16 %v137
    %v254 = vunpack.c.l.b16 %v138
    %v255 = vunpack.c.h.b16 %v138
    %v256 = vunpack.c.l.b16 %v139
    %v257 = vunpack.c.h.b16 %v139
    %v258 = vunpack.c.l.b16 %v140
    %v259 = vunpack.c.h.b16 %v140
    %v260 = vunpack.c.l.b16 %v141
    %v261 = vunpack.c.h.b16 %v141
    %v262 = vunpack.c.l.b16 %v142
    %v263 = vunpack.c.h.b16 %v142
    %v264 = vunpack.c.l.b16 %v143
    %v265 = vunpack.c.h.b16 %v143
    %v266 = vunpack.c.l.b16 %v144
    %v267 = vunpack.c.h.b16 %v144
    %v268 = vunpack.c.l.b16 %v145
    %v269 = vunpack.c.h.b16 %v145
    %v270 = vunpack.c.l.b16 %v146
    %v271 = vunpack.c.h.b16 %v146
    %v272 = vunpack.c.l.b16 %v147
    %v273 = vunpack.c.h.b16 %v147
    %v274 = vunpack.c.l.b16 %v148
    %v275 = vunpack.c.h.b16 %v148
    %v276 = vunpack.c.l.b16 %v149
    %v277 = vunpack.c.h.b16 %v149
    %v278 = vpack.c.b16 %v216, %v214
    %v279 = vpack.c.b16 %v217, %v215
    %v280 = vpack.c.b16 %v220, %v218
    %v281 = vpack.c.b16 %v221, %v219
    %v282 = vpack.c.b16 %v224, %v222
    %v283 = vpack.c.b16 %v225, %v223
    %v284 = vpack.c.b16 %v228, %v226
    %v285 = vpack.c.b16 %v229, %v227
    %v286 = vpack.c.b16 %v232, %v230
    %v287 = vpack.c.b16 %v233, %v231
    %v288 = vpack.c.b16 %v236, %v234
    %v289 = vpack.c.b16 %v237, %v235
    %v290 = vpack.c.b16 %v240, %v238
    %v291 = vpack.c.b16 %v241, %v239
    %v292 = vpack.c.b16 %v244, %v242
    %v293 = vpack.c.b16 %v245, %v243
    %v294 = vpack.c.b16 %v248, %v246
    %v295 = vpack.c.b16 %v249, %v247
    %v296 = vpack.c.b16 %v252, %v250
    %v297 = vpack.c.b16 %v253, %v251
    %v298 = vpack.c.b16 %v256, %v254
    %v299 = vpack.c.b16 %v257, %v255
    %v300 = vpack.c.b16 %v260, %v258
    %v301 = vpack.c.b16 %v261, %v259
    %v302 = vpack.c.b16 %v264, %v262
    %v303 = vpack.c.b16 %v265, %v263
    %v304 = vpack.c.b16 %v268, %v266
    %v305 = vpack.c.b16 %v269, %v267
    %v306 = vpack.c.b16 %v272, %v270
    %v307 = vpack.c.b16 %v273, %v271
    %v308 = vpack.c.b16 %v276, %v274
    %v309 = vpack.c.b16 %v277, %v275
    %v374 = vunpack.c.l.b16 %v150
    %v375 = vunpack.c.l.b16 %v151
    %v376 = vunpack.c.l.b16 %v152
    %v377 = vunpack.c.l.b16 %v153
    %v378 = vunpack.c.l.b16 %v154
    %v379 = vunpack.c.l.b16 %v155
    %v380 = vunpack.c.l.b16 %v156
    %v381 = vunpack.c.l.b16 %v157
    %v382 = vunpack.c.l.b16 %v158
    %v383 = vunpack.c.l.b16 %v159
    %v384 = vunpack.c.l.b16 %v160
    %v385 = vunpack.c.l.b16 %v161
    %v386 = vunpack.c.l.b16 %v162
    %v387 = vunpack.c.l.b16 %v163
    %v388 = vunpack.c.l.b16 %v164
    %v389 = vunpack.c.l.b16 %v165
    %v390 = vunpack.c.l.b16 %v166
    %v391 = vunpack.c.l.b16 %v167
    %v392 = vunpack.c.l.b16 %v168
    %v393 = vunpack.c.l.b16 %v169
    %v394 = vunpack.c.l.b16 %v170
    %v395 = vunpack.c.l.b16 %v171
    %v396 = vunpack.c.l.b16 %v172
    %v397 = vunpack.c.l.b16 %v173
    %v398 = vunpack.c.l.b16 %v174
    %v399 = vunpack.c.l.b16 %v175
    %v400 = vunpack.c.l.b16 %v176
    %v401 = vunpack.c.l.b16 %v177
    %v402 = vunpack.c.l.b16 %v178
    %v403 = vunpack.c.l.b16 %v179
    %v404 = vunpack.c.l.b16 %v180
    %v405 = vunpack.c.l.b16 %v181
    %v406 = vpack.c.b16 %v375, %v374
    %v407 = vpack.c.b16 %v377, %v376
    %v408 = vpack.c.b16 %v379, %v378
    %v409 = vpack.c.b16 %v381, %v380
    %v410 = vpack.c.b16 %v383, %v382
    %v411 = vpack.c.b16 %v385, %v384
    %v412 = vpack.c.b16 %v387, %v386
    %v413 = vpack.c.b16 %v389, %v388
    %v414 = vpack.c.b16 %v391, %v390
    %v415 = vpack.c.b16 %v393, %v392
    %v416 = vpack.c.b16 %v395, %v394
    %v417 = vpack.c.b16 %v397, %v396
    %v418 = vpack.c.b16 %v399, %v398
    %v419 = vpack.c.b16 %v401, %v400
    %v420 = vpack.c.b16 %v403, %v402
    %v421 = vpack.c.b16 %v405, %v404
    %438 = vmatpush.bf16.msra.mxu0 %v413
    %439 = vmatpush.bf16.msra.mxu0 %v412
    %440 = vmatpush.bf16.msra.mxu0 %v411
    %441 = vmatpush.bf16.msra.mxu0 %v410
    %442 = vmatpush.bf16.msra.mxu0 %v409
    %443 = vmatpush.bf16.msra.mxu0 %v408
    %444 = vmatpush.bf16.msra.mxu0 %v407
    %445 = vmatpush.bf16.msra.mxu0 %v406
    %446 = vmatmul.bf16.gmra.mxu0 %v278
    %v447 = vpop.f32.mrf.mxu0
    %v448 = vadd.f32 0.0, %v447
    %v449 = vpop.f32.mrf.mxu0
    %v450 = vadd.f32 0.0, %v449
    %451 = vmatmul.bf16.gmra.mxu0 %v280
    %v452 = vpop.f32.mrf.mxu0
    %v453 = vadd.f32 0.0, %v452
    %v454 = vpop.f32.mrf.mxu0
    %v455 = vadd.f32 0.0, %v454
    %456 = vmatmul.bf16.gmra.mxu0 %v282
    %v457 = vpop.f32.mrf.mxu0
    %v458 = vadd.f32 0.0, %v457
    %v459 = vpop.f32.mrf.mxu0
    %v460 = vadd.f32 0.0, %v459
    %461 = vmatmul.bf16.gmra.mxu0 %v284
    %v462 = vpop.f32.mrf.mxu0
    %v463 = vadd.f32 0.0, %v462
    %v464 = vpop.f32.mrf.mxu0
    %v465 = vadd.f32 0.0, %v464
    %466 = vmatmul.bf16.gmra.mxu0 %v286
    %v467 = vpop.f32.mrf.mxu0
    %v468 = vadd.f32 0.0, %v467
    %v469 = vpop.f32.mrf.mxu0
    %v470 = vadd.f32 0.0, %v469
    %471 = vmatmul.bf16.gmra.mxu0 %v288
    %v472 = vpop.f32.mrf.mxu0
    %v473 = vadd.f32 0.0, %v472
    %v474 = vpop.f32.mrf.mxu0
    %v475 = vadd.f32 0.0, %v474
    %476 = vmatmul.bf16.gmra.mxu0 %v290
    %v477 = vpop.f32.mrf.mxu0
    %v478 = vadd.f32 0.0, %v477
    %v479 = vpop.f32.mrf.mxu0
    %v480 = vadd.f32 0.0, %v479
    %481 = vmatmul.bf16.gmra.mxu0 %v292
    %v482 = vpop.f32.mrf.mxu0
    %v483 = vadd.f32 0.0, %v482
    %v484 = vpop.f32.mrf.mxu0
    %v485 = vadd.f32 0.0, %v484
    %486 = vmatmul.bf16.gmra.mxu0 %v294
    %v487 = vpop.f32.mrf.mxu0
    %v488 = vadd.f32 0.0, %v487
    %v489 = vpop.f32.mrf.mxu0
    %v490 = vadd.f32 0.0, %v489
    %491 = vmatmul.bf16.gmra.mxu0 %v296
    %v492 = vpop.f32.mrf.mxu0
    %v493 = vadd.f32 0.0, %v492
    %v494 = vpop.f32.mrf.mxu0
    %v495 = vadd.f32 0.0, %v494
    %496 = vmatmul.bf16.gmra.mxu0 %v298
    %v497 = vpop.f32.mrf.mxu0
    %v498 = vadd.f32 0.0, %v497
    %v499 = vpop.f32.mrf.mxu0
    %v500 = vadd.f32 0.0, %v499
    %501 = vmatmul.bf16.gmra.mxu0 %v300
    %v502 = vpop.f32.mrf.mxu0
    %v503 = vadd.f32 0.0, %v502
    %v504 = vpop.f32.mrf.mxu0
    %v505 = vadd.f32 0.0, %v504
    %506 = vmatmul.bf16.gmra.mxu0 %v302
    %v507 = vpop.f32.mrf.mxu0
    %v508 = vadd.f32 0.0, %v507
    %v509 = vpop.f32.mrf.mxu0
    %v510 = vadd.f32 0.0, %v509
    %511 = vmatmul.bf16.gmra.mxu0 %v304
    %v512 = vpop.f32.mrf.mxu0
    %v513 = vadd.f32 0.0, %v512
    %v514 = vpop.f32.mrf.mxu0
    %v515 = vadd.f32 0.0, %v514
    %516 = vmatmul.bf16.gmra.mxu0 %v306
    %v517 = vpop.f32.mrf.mxu0
    %v518 = vadd.f32 0.0, %v517
    %v519 = vpop.f32.mrf.mxu0
    %v520 = vadd.f32 0.0, %v519
    %521 = vmatmul.bf16.gmra.mxu0 %v308
    %v522 = vpop.f32.mrf.mxu0
    %v523 = vadd.f32 0.0, %v522
    %v524 = vpop.f32.mrf.mxu0
    %v525 = vadd.f32 0.0, %v524
    %526 = vdwg.mxu0
    %527 = vmatpush.bf16.msra.mxu0 %v421
    %528 = vmatpush.bf16.msra.mxu0 %v420
    %529 = vmatpush.bf16.msra.mxu0 %v419
    %530 = vmatpush.bf16.msra.mxu0 %v418
    %531 = vmatpush.bf16.msra.mxu0 %v417
    %532 = vmatpush.bf16.msra.mxu0 %v416
    %533 = vmatpush.bf16.msra.mxu0 %v415
    %534 = vmatpush.bf16.msra.mxu0 %v414
    %535 = vmatmul.bf16.gmra.mxu0 %v279
    %v536 = vpop.f32.mrf.mxu0
    %v537 = vadd.f32 %v448, %v536
    %v538 = vpop.f32.mrf.mxu0
    %v539 = vadd.f32 %v450, %v538
    %540 = vmatmul.bf16.gmra.mxu0 %v281
    %v541 = vpop.f32.mrf.mxu0
    %v542 = vadd.f32 %v453, %v541
    %v543 = vpop.f32.mrf.mxu0
    %v544 = vadd.f32 %v455, %v543
    %545 = vmatmul.bf16.gmra.mxu0 %v283
    %v546 = vpop.f32.mrf.mxu0
    %v547 = vadd.f32 %v458, %v546
    %v548 = vpop.f32.mrf.mxu0
    %v549 = vadd.f32 %v460, %v548
    %550 = vmatmul.bf16.gmra.mxu0 %v285
    %v551 = vpop.f32.mrf.mxu0
    %v552 = vadd.f32 %v463, %v551
    %v553 = vpop.f32.mrf.mxu0
    %v554 = vadd.f32 %v465, %v553
    %555 = vmatmul.bf16.gmra.mxu0 %v287
    %v556 = vpop.f32.mrf.mxu0
    %v557 = vadd.f32 %v468, %v556
    %v558 = vpop.f32.mrf.mxu0
    %v559 = vadd.f32 %v470, %v558
    %560 = vmatmul.bf16.gmra.mxu0 %v289
    %v561 = vpop.f32.mrf.mxu0
    %v562 = vadd.f32 %v473, %v561
    %v563 = vpop.f32.mrf.mxu0
    %v564 = vadd.f32 %v475, %v563
    %565 = vmatmul.bf16.gmra.mxu0 %v291
    %v566 = vpop.f32.mrf.mxu0
    %v567 = vadd.f32 %v478, %v566
    %v568 = vpop.f32.mrf.mxu0
    %v569 = vadd.f32 %v480, %v568
    %570 = vmatmul.bf16.gmra.mxu0 %v293
    %v571 = vpop.f32.mrf.mxu0
    %v572 = vadd.f32 %v483, %v571
    %v573 = vpop.f32.mrf.mxu0
    %v574 = vadd.f32 %v485, %v573
    %575 = vmatmul.bf16.gmra.mxu0 %v295
    %v576 = vpop.f32.mrf.mxu0
    %v577 = vadd.f32 %v488, %v576
    %v578 = vpop.f32.mrf.mxu0
    %v579 = vadd.f32 %v490, %v578
    %580 = vmatmul.bf16.gmra.mxu0 %v297
    %v581 = vpop.f32.mrf.mxu0
    %v582 = vadd.f32 %v493, %v581
    %v583 = vpop.f32.mrf.mxu0
    %v584 = vadd.f32 %v495, %v583
    %585 = vmatmul.bf16.gmra.mxu0 %v299
    %v586 = vpop.f32.mrf.mxu0
    %v587 = vadd.f32 %v498, %v586
    %v588 = vpop.f32.mrf.mxu0
    %v589 = vadd.f32 %v500, %v588
    %590 = vmatmul.bf16.gmra.mxu0 %v301
    %v591 = vpop.f32.mrf.mxu0
    %v592 = vadd.f32 %v503, %v591
    %v593 = vpop.f32.mrf.mxu0
    %v594 = vadd.f32 %v505, %v593
    %595 = vmatmul.bf16.gmra.mxu0 %v303
    %v596 = vpop.f32.mrf.mxu0
    %v597 = vadd.f32 %v508, %v596
    %v598 = vpop.f32.mrf.mxu0
    %v599 = vadd.f32 %v510, %v598
    %600 = vmatmul.bf16.gmra.mxu0 %v305
    %v601 = vpop.f32.mrf.mxu0
    %v602 = vadd.f32 %v513, %v601
    %v603 = vpop.f32.mrf.mxu0
    %v604 = vadd.f32 %v515, %v603
    %605 = vmatmul.bf16.gmra.mxu0 %v307
    %v606 = vpop.f32.mrf.mxu0
    %v607 = vadd.f32 %v518, %v606
    %v608 = vpop.f32.mrf.mxu0
    %v609 = vadd.f32 %v520, %v608
    %610 = vmatmul.bf16.gmra.mxu0 %v309
    %v611 = vpop.f32.mrf.mxu0
    %v612 = vadd.f32 %v523, %v611
    %v613 = vpop.f32.mrf.mxu0
    %v614 = vadd.f32 %v525, %v613
    %615 = vdwg.mxu0
    %v616 = vadd.f32 %v86, %v537
    %v617 = vadd.f32 %v87, %v539
    %v618 = vadd.f32 %v88, %v542
    %v619 = vadd.f32 %v89, %v544
    %v620 = vadd.f32 %v90, %v547
    %v621 = vadd.f32 %v91, %v549
    %v622 = vadd.f32 %v92, %v552
    %v623 = vadd.f32 %v93, %v554
    %v624 = vadd.f32 %v94, %v557
    %v625 = vadd.f32 %v95, %v559
    %v626 = vadd.f32 %v96, %v562
    %v627 = vadd.f32 %v97, %v564
    %v628 = vadd.f32 %v98, %v567
    %v629 = vadd.f32 %v99, %v569
    %v630 = vadd.f32 %v100, %v572
    %v631 = vadd.f32 %v101, %v574
    %v632 = vadd.f32 %v102, %v577
    %v633 = vadd.f32 %v103, %v579
    %v634 = vadd.f32 %v104, %v582
    %v635 = vadd.f32 %v105, %v584
    %v636 = vadd.f32 %v106, %v587
    %v637 = vadd.f32 %v107, %v589
    %v638 = vadd.f32 %v108, %v592
    %v639 = vadd.f32 %v109, %v594
    %v640 = vadd.f32 %v110, %v597
    %v641 = vadd.f32 %v111, %v599
    %v642 = vadd.f32 %v112, %v602
    %v643 = vadd.f32 %v113, %v604
    %v644 = vadd.f32 %v114, %v607
    %v645 = vadd.f32 %v115, %v609
    %v646 = vadd.f32 %v116, %v612
    %v647 = vadd.f32 %v117, %v614
    %648 = vst [vmem:[#allocation2] sm:$0xff] %v616
    %649 = vst [vmem:[#allocation2 + $0x8] sm:$0xff] %v617
    %650 = vst [vmem:[#allocation2 + $0x10] sm:$0xff] %v618
    %651 = vst [vmem:[#allocation2 + $0x18] sm:$0xff] %v619
    %652 = vst [vmem:[#allocation2 + $0x20] sm:$0xff] %v620
    %653 = vst [vmem:[#allocation2 + $0x28] sm:$0xff] %v621
    %654 = vst [vmem:[#allocation2 + $0x30] sm:$0xff] %v622
    %655 = vst [vmem:[#allocation2 + $0x38] sm:$0xff] %v623
    %656 = vst [vmem:[#allocation2 + $0x40] sm:$0xff] %v624
    %657 = vst [vmem:[#allocation2 + $0x48] sm:$0xff] %v625
    %658 = vst [vmem:[#allocation2 + $0x50] sm:$0xff] %v626
    %659 = vst [vmem:[#allocation2 + $0x58] sm:$0xff] %v627
    %660 = vst [vmem:[#allocation2 + $0x60] sm:$0xff] %v628
    %661 = vst [vmem:[#allocation2 + $0x68] sm:$0xff] %v629
    %662 = vst [vmem:[#allocation2 + $0x70] sm:$0xff] %v630
    %663 = vst [vmem:[#allocation2 + $0x78] sm:$0xff] %v631
    %664 = vst [vmem:[#allocation2 + $0x80] sm:$0xff] %v632
    %665 = vst [vmem:[#allocation2 + $0x88] sm:$0xff] %v633
    %666 = vst [vmem:[#allocation2 + $0x90] sm:$0xff] %v634
    %667 = vst [vmem:[#allocation2 + $0x98] sm:$0xff] %v635
    %668 = vst [vmem:[#allocation2 + $0xa0] sm:$0xff] %v636
    %669 = vst [vmem:[#allocation2 + $0xa8] sm:$0xff] %v637
    %670 = vst [vmem:[#allocation2 + $0xb0] sm:$0xff] %v638
    %671 = vst [vmem:[#allocation2 + $0xb8] sm:$0xff] %v639
    %672 = vst [vmem:[#allocation2 + $0xc0] sm:$0xff] %v640
    %673 = vst [vmem:[#allocation2 + $0xc8] sm:$0xff] %v641
    %674 = vst [vmem:[#allocation2 + $0xd0] sm:$0xff] %v642
    %675 = vst [vmem:[#allocation2 + $0xd8] sm:$0xff] %v643
    %676 = vst [vmem:[#allocation2 + $0xe0] sm:$0xff] %v644
    %677 = vst [vmem:[#allocation2 + $0xe8] sm:$0xff] %v645
    %678 = vst [vmem:[#allocation2 + $0xf0] sm:$0xff] %v646
    %679 = vst [vmem:[#allocation2 + $0xf8] sm:$0xff] %v647
    // Predicated region
    $region30: #{tpu_custom_call.1} parent=1 // pred_check
      %p680 = pneg %p50
    $region31: #{tpu_custom_call.1} parent=1 // pred_check_branch
      %682 = sbr.rel (%p680) target = $region33
    $region32: #{tpu_custom_call.1} parent=1 // pred_region
      %v683 = vld [vmem:[#allocation2] sm:$0xff]
      %v684 = vld [vmem:[#allocation2 + $0x8] sm:$0xff]
      %v685 = vld [vmem:[#allocation2 + $0x10] sm:$0xff]
      %v686 = vld [vmem:[#allocation2 + $0x18] sm:$0xff]
      %v687 = vld [vmem:[#allocation2 + $0x20] sm:$0xff]
      %v688 = vld [vmem:[#allocation2 + $0x28] sm:$0xff]
      %v689 = vld [vmem:[#allocation2 + $0x30] sm:$0xff]
      %v690 = vld [vmem:[#allocation2 + $0x38] sm:$0xff]
      %v691 = vld [vmem:[#allocation2 + $0x40] sm:$0xff]
      %v692 = vld [vmem:[#allocation2 + $0x48] sm:$0xff]
      %v693 = vld [vmem:[#allocation2 + $0x50] sm:$0xff]
      %v694 = vld [vmem:[#allocation2 + $0x58] sm:$0xff]
      %v695 = vld [vmem:[#allocation2 + $0x60] sm:$0xff]
      %v696 = vld [vmem:[#allocation2 + $0x68] sm:$0xff]
      %v697 = vld [vmem:[#allocation2 + $0x70] sm:$0xff]
      %v698 = vld [vmem:[#allocation2 + $0x78] sm:$0xff]
      %v699 = vld [vmem:[#allocation2 + $0x80] sm:$0xff]
      %v700 = vld [vmem:[#allocation2 + $0x88] sm:$0xff]
      %v701 = vld [vmem:[#allocation2 + $0x90] sm:$0xff]
      %v702 = vld [vmem:[#allocation2 + $0x98] sm:$0xff]
      %v703 = vld [vmem:[#allocation2 + $0xa0] sm:$0xff]
      %v704 = vld [vmem:[#allocation2 + $0xa8] sm:$0xff]
      %v705 = vld [vmem:[#allocation2 + $0xb0] sm:$0xff]
      %v706 = vld [vmem:[#allocation2 + $0xb8] sm:$0xff]
      %v707 = vld [vmem:[#allocation2 + $0xc0] sm:$0xff]
      %v708 = vld [vmem:[#allocation2 + $0xc8] sm:$0xff]
      %v709 = vld [vmem:[#allocation2 + $0xd0] sm:$0xff]
      %v710 = vld [vmem:[#allocation2 + $0xd8] sm:$0xff]
      %v711 = vld [vmem:[#allocation2 + $0xe0] sm:$0xff]
      %v712 = vld [vmem:[#allocation2 + $0xe8] sm:$0xff]
      %v713 = vld [vmem:[#allocation2 + $0xf0] sm:$0xff]
      %v714 = vld [vmem:[#allocation2 + $0xf8] sm:$0xff]
      %v715 = vld [vmem:[%s2] sm:$0x1]
      %v717 = vperm.slane %v715, 0
      %v719 = vmul.f32 %v683, %v717
      %v720 = vmul.f32 %v684, %v717
      %v721 = vmul.f32 %v685, %v717
      %v722 = vmul.f32 %v686, %v717
      %v723 = vmul.f32 %v687, %v717
      %v724 = vmul.f32 %v688, %v717
      %v725 = vmul.f32 %v689, %v717
      %v726 = vmul.f32 %v690, %v717
      %v727 = vmul.f32 %v691, %v717
      %v728 = vmul.f32 %v692, %v717
      %v729 = vmul.f32 %v693, %v717
      %v730 = vmul.f32 %v694, %v717
      %v731 = vmul.f32 %v695, %v717
      %v732 = vmul.f32 %v696, %v717
      %v733 = vmul.f32 %v697, %v717
      %v734 = vmul.f32 %v698, %v717
      %v735 = vmul.f32 %v699, %v717
      %v736 = vmul.f32 %v700, %v717
      %v737 = vmul.f32 %v701, %v717
      %v738 = vmul.f32 %v702, %v717
      %v739 = vmul.f32 %v703, %v717
      %v740 = vmul.f32 %v704, %v717
      %v741 = vmul.f32 %v705, %v717
      %v742 = vmul.f32 %v706, %v717
      %v743 = vmul.f32 %v707, %v717
      %v744 = vmul.f32 %v708, %v717
      %v745 = vmul.f32 %v709, %v717
      %v746 = vmul.f32 %v710, %v717
      %v747 = vmul.f32 %v711, %v717
      %v748 = vmul.f32 %v712, %v717
      %v749 = vmul.f32 %v713, %v717
      %v750 = vmul.f32 %v714, %v717
      %v751 = vld [vmem:[%s3] sm:$0x1]
      %v753 = vperm.slane %v751, 0
      %v755 = vadd.f32 %v719, %v753
      %v756 = vadd.f32 %v720, %v753
      %v757 = vadd.f32 %v721, %v753
      %v758 = vadd.f32 %v722, %v753
      %v759 = vadd.f32 %v723, %v753
      %v760 = vadd.f32 %v724, %v753
      %v761 = vadd.f32 %v725, %v753
      %v762 = vadd.f32 %v726, %v753
      %v763 = vadd.f32 %v727, %v753
      %v764 = vadd.f32 %v728, %v753
      %v765 = vadd.f32 %v729, %v753
      %v766 = vadd.f32 %v730, %v753
      %v767 = vadd.f32 %v731, %v753
      %v768 = vadd.f32 %v732, %v753
      %v769 = vadd.f32 %v733, %v753
      %v770 = vadd.f32 %v734, %v753
      %v771 = vadd.f32 %v735, %v753
      %v772 = vadd.f32 %v736, %v753
      %v773 = vadd.f32 %v737, %v753
      %v774 = vadd.f32 %v738, %v753
      %v775 = vadd.f32 %v739, %v753
      %v776 = vadd.f32 %v740, %v753
      %v777 = vadd.f32 %v741, %v753
      %v778 = vadd.f32 %v742, %v753
      %v779 = vadd.f32 %v743, %v753
      %v780 = vadd.f32 %v744, %v753
      %v781 = vadd.f32 %v745, %v753
      %v782 = vadd.f32 %v746, %v753
      %v783 = vadd.f32 %v747, %v753
      %v784 = vadd.f32 %v748, %v753
      %v785 = vadd.f32 %v749, %v753
      %v786 = vadd.f32 %v750, %v753
      %v787 = vmax.f32 %v755, 0.0
      %v788 = vmax.f32 %v756, 0.0
      %v789 = vmax.f32 %v757, 0.0
      %v790 = vmax.f32 %v758, 0.0
      %v791 = vmax.f32 %v759, 0.0
      %v792 = vmax.f32 %v760, 0.0
      %v793 = vmax.f32 %v761, 0.0
      %v794 = vmax.f32 %v762, 0.0
      %v795 = vmax.f32 %v763, 0.0
      %v796 = vmax.f32 %v764, 0.0
      %v797 = vmax.f32 %v765, 0.0
      %v798 = vmax.f32 %v766, 0.0
      %v799 = vmax.f32 %v767, 0.0
      %v800 = vmax.f32 %v768, 0.0
      %v801 = vmax.f32 %v769, 0.0
      %v802 = vmax.f32 %v770, 0.0
      %v803 = vmax.f32 %v771, 0.0
      %v804 = vmax.f32 %v772, 0.0
      %v805 = vmax.f32 %v773, 0.0
      %v806 = vmax.f32 %v774, 0.0
      %v807 = vmax.f32 %v775, 0.0
      %v808 = vmax.f32 %v776, 0.0
      %v809 = vmax.f32 %v777, 0.0
      %v810 = vmax.f32 %v778, 0.0
      %v811 = vmax.f32 %v779, 0.0
      %v812 = vmax.f32 %v780, 0.0
      %v813 = vmax.f32 %v781, 0.0
      %v814 = vmax.f32 %v782, 0.0
      %v815 = vmax.f32 %v783, 0.0
      %v816 = vmax.f32 %v784, 0.0
      %v817 = vmax.f32 %v785, 0.0
      %v818 = vmax.f32 %v786, 0.0
      %819 = vst [vmem:[#allocation8] sm:$0xff] %v787
      %820 = vst [vmem:[#allocation8 + $0x8] sm:$0xff] %v788
      %821 = vst [vmem:[#allocation8 + $0x10] sm:$0xff] %v789
      %822 = vst [vmem:[#allocation8 + $0x18] sm:$0xff] %v790
      %823 = vst [vmem:[#allocation8 + $0x20] sm:$0xff] %v791
      %824 = vst [vmem:[#allocation8 + $0x28] sm:$0xff] %v792
      %825 = vst [vmem:[#allocation8 + $0x30] sm:$0xff] %v793
      %826 = vst [vmem:[#allocation8 + $0x38] sm:$0xff] %v794
      %827 = vst [vmem:[#allocation8 + $0x40] sm:$0xff] %v795
      %828 = vst [vmem:[#allocation8 + $0x48] sm:$0xff] %v796
      %829 = vst [vmem:[#allocation8 + $0x50] sm:$0xff] %v797
      %830 = vst [vmem:[#allocation8 + $0x58] sm:$0xff] %v798
      %831 = vst [vmem:[#allocation8 + $0x60] sm:$0xff] %v799
      %832 = vst [vmem:[#allocation8 + $0x68] sm:$0xff] %v800
      %833 = vst [vmem:[#allocation8 + $0x70] sm:$0xff] %v801
      %834 = vst [vmem:[#allocation8 + $0x78] sm:$0xff] %v802
      %835 = vst [vmem:[#allocation8 + $0x80] sm:$0xff] %v803
      %836 = vst [vmem:[#allocation8 + $0x88] sm:$0xff] %v804
      %837 = vst [vmem:[#allocation8 + $0x90] sm:$0xff] %v805
      %838 = vst [vmem:[#allocation8 + $0x98] sm:$0xff] %v806
      %839 = vst [vmem:[#allocation8 + $0xa0] sm:$0xff] %v807
      %840 = vst [vmem:[#allocation8 + $0xa8] sm:$0xff] %v808
      %841 = vst [vmem:[#allocation8 + $0xb0] sm:$0xff] %v809
      %842 = vst [vmem:[#allocation8 + $0xb8] sm:$0xff] %v810
      %843 = vst [vmem:[#allocation8 + $0xc0] sm:$0xff] %v811
      %844 = vst [vmem:[#allocation8 + $0xc8] sm:$0xff] %v812
      %845 = vst [vmem:[#allocation8 + $0xd0] sm:$0xff] %v813
      %846 = vst [vmem:[#allocation8 + $0xd8] sm:$0xff] %v814
      %847 = vst [vmem:[#allocation8 + $0xe0] sm:$0xff] %v815
      %848 = vst [vmem:[#allocation8 + $0xe8] sm:$0xff] %v816
      %849 = vst [vmem:[#allocation8 + $0xf0] sm:$0xff] %v817
      %850 = vst [vmem:[#allocation8 + $0xf8] sm:$0xff] %v818
    $region33: #{tpu_custom_call.1} parent=1 // pred_fallthru
      _
    // Predicated region
    $region34: #{tpu_custom_call.1} parent=1 // pred_check
      _
    $region35: #{tpu_custom_call.1} parent=1 // pred_check_branch
      %852 = sbr.rel (0) target = $region37
    $region36: #{tpu_custom_call.1} parent=1 // pred_region
      %854 = vsyncadd [#allocation5], 0
      %s855 = sshll.u32 [#allocation8], 4
      %s856 = int_to_ptr.vmem [resolvable:$true] %s855
      %s857 = sshll.u32 %s4, 4
      %s858 = int_to_ptr.hbm [resolvable:$true] %s857
      %863 = dma.vmem_to_hbm [thread:$0]  %s856, 4096, %s858, [#allocation5], 128, 128, 8
    $region37: #{tpu_custom_call.1} parent=1 // pred_fallthru
      _
    // Predicated region
    $region38: #{tpu_custom_call.1} parent=1 // pred_check
      _
    $region39: #{tpu_custom_call.1} parent=1 // pred_check_branch
      %865 = sbr.rel (0) target = $region41
    $region40: #{tpu_custom_call.1} parent=1 // pred_region
      %867 = dma.done [#allocation5], 4096
    $region41: #{tpu_custom_call.1} parent=1 // pred_fallthru
      _
    %868 = vsyncpa [#allocation4], 1
    %869 = vsyncpa [#allocation7], 1
    %870 = vsyncpa [#allocation5], 1

</llo_original>
